<compile_context>
chip_gen: v7x
topology: tpu7x:2x2x1
jax: 0.10.0
libtpu: 0.0.40
codegen_flags: <defaults>
</compile_context>

<pallas_src>
import jax
import jax.numpy as jnp
from jax.experimental import pallas as pl
from jax.experimental.pallas import tpu as pltpu


def _projector_kernel(r_ref, w_ref, b_ref, o_ref):
    # Linear: [tb, r_dim] @ [r_dim, z_dim] + [1, z_dim]  (MXU, f32 accumulate)
    z = jnp.dot(r_ref[...], w_ref[...], preferred_element_type=jnp.float32)
    z = z + b_ref[...]

    # F.normalize(z, dim=1) == z / max(||z||_2, 1e-12)
    # Implemented as z * rsqrt(max(||z||^2, 1e-24)): same clamp semantics, but
    # the transcendental goes to the EUP slot and there is no VALU divide.
    sq_norm = jnp.sum(z * z, axis=1, keepdims=True)
    inv_norm = jax.lax.rsqrt(jnp.maximum(sq_norm, 1e-24))
    o_ref[...] = (z * inv_norm).astype(o_ref.dtype)


def projector_forward(r, weight, bias, *, block_b=1024):
    """r: [B, r_dim]; weight: [r_dim, z_dim]; bias: [z_dim] -> z: [B, z_dim]."""
    B, r_dim = r.shape
    z_dim = weight.shape[1]
    bias2d = bias.reshape(1, z_dim)

    if B <= block_b:
        # Small batch: single grid-less call; all operands live in VMEM for the
        # whole kernel.  No grid, no index_maps, no double buffering.
        return pl.pallas_call(
            _projector_kernel,
            out_shape=jax.ShapeDtypeStruct((B, z_dim), jnp.float32),
            in_specs=[
                pl.BlockSpec(memory_space=pltpu.MemorySpace.VMEM),
                pl.BlockSpec(memory_space=pltpu.MemorySpace.VMEM),
                pl.BlockSpec(memory_space=pltpu.MemorySpace.VMEM),
            ],
            out_specs=pl.BlockSpec(memory_space=pltpu.MemorySpace.VMEM),
        )(r, weight, bias2d)

    # Large batch: tile over B.  Weight/bias index_maps are constant so the
    # 400x10 weight stays VMEM-resident (not re-DMA'd per step); the B axis is
    # "parallel" so v7x shards grid steps across its 2 TensorCores.
    # block_b=1024 keeps double-buffered r/out tiles (~3.3 MiB + ~1 MiB) well
    # inside v7x's 32 MiB default scoped-VMEM limit; raise vmem_limit_bytes in
    # CompilerParams before growing block_b much further.
    # TODO(synk): for very large B, pipeline_mode=pl.Buffered(1) on the
    # constant weight/bias specs and a lane-dense (128-padded) output layout
    # would remove the remaining redundant buffering / masked vst.msk stores.
    assert block_b % 8 == 0
    num_blocks = pl.cdiv(B, block_b)
    b_pad = num_blocks * block_b
    r_p = jnp.pad(r, ((0, b_pad - B), (0, 0))) if b_pad != B else r

    out = pl.pallas_call(
        _projector_kernel,
        out_shape=jax.ShapeDtypeStruct((b_pad, z_dim), jnp.float32),
        grid=(num_blocks,),
        in_specs=[
            pl.BlockSpec((block_b, r_dim), lambda i: (i, 0)),
            pl.BlockSpec((r_dim, z_dim), lambda i: (0, 0)),
            pl.BlockSpec((1, z_dim), lambda i: (0, 0)),
        ],
        out_specs=pl.BlockSpec((block_b, z_dim), lambda i: (i, 0)),
        compiler_params=pltpu.CompilerParams(
            dimension_semantics=("parallel",),
        ),
    )(r_p, weight, bias2d)
    return out[:B]


def _reference(r, weight, bias):
    z = r @ weight + bias
    norm = jnp.sqrt(jnp.sum(z * z, axis=1, keepdims=True))
    return z / jnp.maximum(norm, 1e-12)


if __name__ == "__main__":
    r_dim, z_dim = 400, 10

    key = jax.random.PRNGKey(0)
    k_r, k_w, k_b = jax.random.split(key, 3)

    # Deterministic init mirroring nn.Linear's uniform(-1/sqrt(in), 1/sqrt(in))
    bound = 1.0 / (r_dim ** 0.5)
    weight = jax.random.uniform(k_w, (r_dim, z_dim), jnp.float32, -bound, bound)
    bias = jax.random.uniform(k_b, (z_dim,), jnp.float32, -bound, bound)

    # Small batch -> grid-less fast path.
    batch = 8
    r = jax.random.normal(k_r, (batch, r_dim), jnp.float32)
    z = projector_forward(r, weight, bias)
    jax.block_until_ready(z)
    z_ref = _reference(r, weight, bias)
    assert z.shape == (batch, z_dim)
    assert jnp.allclose(z, z_ref, atol=1e-5, rtol=1e-5)

    # Larger batch -> exercise the B-tiled path (tiny tile just for the test).
    batch_big = 40
    r_big = jax.random.normal(k_r, (batch_big, r_dim), jnp.float32)
    z_big = projector_forward(r_big, weight, bias, block_b=16)
    jax.block_until_ready(z_big)
    z_big_ref = _reference(r_big, weight, bias)
    assert z_big.shape == (batch_big, z_dim)
    assert jnp.allclose(z_big, z_big_ref, atol=1e-5, rtol=1e-5)

    print("KERNEL_OK")
</pallas_src>

<mosaic_0001>
module attributes {stable_mosaic.version = 11 : i64} {
  func.func @_projector_kernel(%arg0: memref<8x400xf32, #tpu.memory_space<vmem>>, %arg1: memref<400x10xf32, #tpu.memory_space<vmem>>, %arg2: memref<1x10xf32, #tpu.memory_space<vmem>>, %arg3: memref<8x10xf32, #tpu.memory_space<vmem>>) attributes {dimension_semantics = [], scalar_prefetch = 0 : i64, scratch_operands = 0 : i64, tpu.core_type = #tpu.core_type<tc>} {
    %c0 = arith.constant 0 : index
    %c0_0 = arith.constant 0 : index
    %0 = vector.load %arg0[%c0, %c0_0] : memref<8x400xf32, #tpu.memory_space<vmem>>, vector<8x400xf32>
    %c0_1 = arith.constant 0 : index
    %c0_2 = arith.constant 0 : index
    %1 = vector.load %arg1[%c0_1, %c0_2] : memref<400x10xf32, #tpu.memory_space<vmem>>, vector<400x10xf32>
    %cst = arith.constant dense<0.000000e+00> : vector<8x10xf32>
    %2 = tpu.matmul %0, %1, %cst {dimension_numbers = #tpu.dot_dimension_numbers<[1], [0], [0], [1], [0, 0, 1, 1], [], []>} : vector<8x400xf32>, vector<400x10xf32>, vector<8x10xf32> -> vector<8x10xf32>
    %c0_3 = arith.constant 0 : index
    %c0_4 = arith.constant 0 : index
    %3 = vector.load %arg2[%c0_3, %c0_4] : memref<1x10xf32, #tpu.memory_space<vmem>>, vector<1x10xf32>
    %4 = vector.broadcast %3 : vector<1x10xf32> to vector<8x10xf32>
    %5 = arith.addf %2, %4 : vector<8x10xf32>
    %6 = arith.mulf %5, %5 : vector<8x10xf32>
    %cst_5 = arith.constant dense<0.000000e+00> : vector<8xf32>
    %7 = vector.multi_reduction <add>, %6, %cst_5 [1] : vector<8x10xf32> to vector<8xf32>
    %8 = vector.shape_cast %7 : vector<8xf32> to vector<8x1xf32>
    %cst_6 = arith.constant 1.000000e-24 : f32
    %9 = vector.broadcast %cst_6 : f32 to vector<8x1xf32>
    %10 = arith.maximumf %8, %9 : vector<8x1xf32>
    %11 = math.rsqrt %10 : vector<8x1xf32>
    %12 = vector.broadcast %11 : vector<8x1xf32> to vector<8x10xf32>
    %13 = arith.mulf %5, %12 : vector<8x10xf32>
    %c0_7 = arith.constant 0 : index
    %c0_8 = arith.constant 0 : index
    %14 = vector.load %arg3[%c0_7, %c0_8] : memref<8x10xf32, #tpu.memory_space<vmem>>, vector<8x10xf32>
    tpu.vector_store %arg3[%c0_7, %c0_8], %13 {strides = array<i32>} : memref<8x10xf32, #tpu.memory_space<vmem>>, vector<8x10xf32>,
    return
  }
}

</mosaic_0001>

<llo_original>
// kernel: tpu_custom_call.1
$region0: #{tpu_custom_call.1}
  #allocation0 [shape = 'u32[]', space=smem, size = 0x4, offset = 0x4, fixed_abs, tag = 'smem constant byte address 0x4 - core index']
  #allocation1 [shape = 'u32[144,128]{1,0:T(1,128)}', space=vmem, size = 0x12000, scoped, tag = 'internal scratch']
  %s0 = inlined_call_operand.vmem [shape: f32[8,400], index: 0, kind: input, shape index: {}]
  %s1 = inlined_call_operand.vmem [shape: f32[400,10], index: 1, kind: input, shape index: {}]
  %s2 = inlined_call_operand.vmem [shape: f32[1,10], index: 2, kind: input, shape index: {}]
  %s3 = inlined_call_operand.hbm [shape: f32[8,10], index: 3, kind: output, shape index: {}]
  %s4 = sld [smem:[#allocation0]]
  $region22: #{tpu_custom_call.1} parent=0
    _
  %s6 = ssub.s32 1, %s4
  %s7 = scalar_select 0, %s6, %s4
  $region1: #{tpu_custom_call.1} parent=0
    #allocation2 [shape = 'u8[4096]{0}', space=vmem, size = 0x1000, scoped, tag = 'output window, operand 0, single buffered']
    #allocation3 [shape = 's32[1]{0}', space=sflag, size = 0x4, scoped, tag = 'scoped memory for tpu_custom_call.1']
    %8 = vsyncpa [#allocation3], 0
    // Predicated region
    $region2: #{tpu_custom_call.1} parent=1 // pred_check
      _
    $region3: #{tpu_custom_call.1} parent=1 // pred_check_branch
      %10 = sbr.rel (0) target = $region5
    $region4: #{tpu_custom_call.1} parent=1 // pred_region
      _
    $region5: #{tpu_custom_call.1} parent=1 // pred_fallthru
      _
    // Predicated region
    $region6: #{tpu_custom_call.1} parent=1 // pred_check
      _
    $region7: #{tpu_custom_call.1} parent=1 // pred_check_branch
      %12 = sbr.rel (0) target = $region9
    $region8: #{tpu_custom_call.1} parent=1 // pred_region
      _
    $region9: #{tpu_custom_call.1} parent=1 // pred_fallthru
      _
    // Predicated region
    $region10: #{tpu_custom_call.1} parent=1 // pred_check
      _
    $region11: #{tpu_custom_call.1} parent=1 // pred_check_branch
      %14 = sbr.rel (0) target = $region13
    $region12: #{tpu_custom_call.1} parent=1 // pred_region
      _
    $region13: #{tpu_custom_call.1} parent=1 // pred_fallthru
      _
    %v15 = vld [vmem:[%s0] sm:$0xff]
    %v16 = vld [vmem:[%s0 + $0x8] sm:$0xff]
    %v17 = vld [vmem:[%s0 + $0x10] sm:$0xff]
    %v18 = vld [vmem:[%s0 + $0x18] sm:$0xff]
    %v19 = vld [vmem:[%s1] sm:$0xff]
    %v20 = vld [vmem:[%s1 + $0x8] sm:$0xff]
    %v21 = vld [vmem:[%s1 + $0x10] sm:$0xff]
    %v22 = vld [vmem:[%s1 + $0x18] sm:$0xff]
    %v23 = vld [vmem:[%s1 + $0x20] sm:$0xff]
    %v24 = vld [vmem:[%s1 + $0x28] sm:$0xff]
    %v25 = vld [vmem:[%s1 + $0x30] sm:$0xff]
    %v26 = vld [vmem:[%s1 + $0x38] sm:$0xff]
    %v27 = vld [vmem:[%s1 + $0x40] sm:$0xff]
    %v28 = vld [vmem:[%s1 + $0x48] sm:$0xff]
    %v29 = vld [vmem:[%s1 + $0x50] sm:$0xff]
    %v30 = vld [vmem:[%s1 + $0x58] sm:$0xff]
    %v31 = vld [vmem:[%s1 + $0x60] sm:$0xff]
    %v32 = vld [vmem:[%s1 + $0x68] sm:$0xff]
    %v33 = vld [vmem:[%s1 + $0x70] sm:$0xff]
    %v34 = vld [vmem:[%s1 + $0x78] sm:$0xff]
    %v35 = vld [vmem:[%s1 + $0x80] sm:$0xff]
    %v36 = vld [vmem:[%s1 + $0x88] sm:$0xff]
    %v37 = vld [vmem:[%s1 + $0x90] sm:$0xff]
    %v38 = vld [vmem:[%s1 + $0x98] sm:$0xff]
    %v39 = vld [vmem:[%s1 + $0xa0] sm:$0xff]
    %v40 = vld [vmem:[%s1 + $0xa8] sm:$0xff]
    %v41 = vld [vmem:[%s1 + $0xb0] sm:$0xff]
    %v42 = vld [vmem:[%s1 + $0xb8] sm:$0xff]
    %v43 = vld [vmem:[%s1 + $0xc0] sm:$0xff]
    %v44 = vld [vmem:[%s1 + $0xc8] sm:$0xff]
    %v45 = vld [vmem:[%s1 + $0xd0] sm:$0xff]
    %v46 = vld [vmem:[%s1 + $0xd8] sm:$0xff]
    %v47 = vld [vmem:[%s1 + $0xe0] sm:$0xff]
    %v48 = vld [vmem:[%s1 + $0xe8] sm:$0xff]
    %v49 = vld [vmem:[%s1 + $0xf0] sm:$0xff]
    %v50 = vld [vmem:[%s1 + $0xf8] sm:$0xff]
    %v51 = vld [vmem:[%s1 + $0x100] sm:$0xff]
    %v52 = vld [vmem:[%s1 + $0x108] sm:$0xff]
    %v53 = vld [vmem:[%s1 + $0x110] sm:$0xff]
    %v54 = vld [vmem:[%s1 + $0x118] sm:$0xff]
    %v55 = vld [vmem:[%s1 + $0x120] sm:$0xff]
    %v56 = vld [vmem:[%s1 + $0x128] sm:$0xff]
    %v57 = vld [vmem:[%s1 + $0x130] sm:$0xff]
    %v58 = vld [vmem:[%s1 + $0x138] sm:$0xff]
    %v59 = vld [vmem:[%s1 + $0x140] sm:$0xff]
    %v60 = vld [vmem:[%s1 + $0x148] sm:$0xff]
    %v61 = vld [vmem:[%s1 + $0x150] sm:$0xff]
    %v62 = vld [vmem:[%s1 + $0x158] sm:$0xff]
    %v63 = vld [vmem:[%s1 + $0x160] sm:$0xff]
    %v64 = vld [vmem:[%s1 + $0x168] sm:$0xff]
    %v65 = vld [vmem:[%s1 + $0x170] sm:$0xff]
    %v66 = vld [vmem:[%s1 + $0x178] sm:$0xff]
    %v67 = vld [vmem:[%s1 + $0x180] sm:$0xff]
    %v68 = vld [vmem:[%s1 + $0x188] sm:$0xff]
    %v69 = vld [vmem:[%s2] sm:$0x1]
    %v71 = vlaneseq
    %v72 = vshrl.u32 %v71, 7
    %v73 = vsub.s32 0, %v72
    %v74 = vrot.slane %v69, %v73
    %vm76 = vcmask 130048
    %v78 = vsel %vm76, %v18, 0
    %80 = vmatprep.subr.mxu0 0.0
    %81 = vmatpush1.msra.mxu0 %v19
    %82 = vmatprep.subr.mxu0 0.0
    %83 = vmatpush1.msra.mxu0 %v20
    %84 = vmatprep.subr.mxu0 0.0
    %85 = vmatpush1.msra.mxu0 %v21
    %86 = vmatprep.subr.mxu0 0.0
    %87 = vmatpush1.msra.mxu0 %v22
    %88 = vmatprep.subr.mxu0 0.0
    %89 = vmatpush1.msra.mxu0 %v23
    %90 = vmatprep.subr.mxu0 0.0
    %91 = vmatpush1.msra.mxu0 %v24
    %92 = vmatprep.subr.mxu0 0.0
    %93 = vmatpush1.msra.mxu0 %v25
    %94 = vmatprep.subr.mxu0 0.0
    %95 = vmatpush1.msra.mxu0 %v26
    %96 = vmatprep.subr.mxu0 0.0
    %97 = vmatpush1.msra.mxu0 %v27
    %98 = vmatprep.subr.mxu0 0.0
    %99 = vmatpush1.msra.mxu0 %v28
    %100 = vmatprep.subr.mxu0 0.0
    %101 = vmatpush1.msra.mxu0 %v29
    %102 = vmatprep.subr.mxu0 0.0
    %103 = vmatpush1.msra.mxu0 %v30
    %104 = vmatprep.subr.mxu0 0.0
    %105 = vmatpush1.msra.mxu0 %v31
    %106 = vmatprep.subr.mxu0 0.0
    %107 = vmatpush1.msra.mxu0 %v32
    %108 = vmatprep.subr.mxu0 0.0
    %109 = vmatpush1.msra.mxu0 %v33
    %110 = vmatprep.subr.mxu0 0.0
    %111 = vmatpush1.msra.mxu0 %v34
    %112 = vmatprep.subr.mxu0 0.0
    %113 = vmatpush1.msra.mxu0 %v35
    %114 = vmatprep.subr.mxu0 0.0
    %115 = vmatpush1.msra.mxu0 %v36
    %116 = vmatprep.subr.mxu0 0.0
    %117 = vmatpush1.msra.mxu0 %v37
    %118 = vmatprep.subr.mxu0 0.0
    %119 = vmatpush1.msra.mxu0 %v38
    %120 = vmatprep.subr.mxu0 0.0
    %121 = vmatpush1.msra.mxu0 %v39
    %122 = vmatprep.subr.mxu0 0.0
    %123 = vmatpush1.msra.mxu0 %v40
    %124 = vmatprep.subr.mxu0 0.0
    %125 = vmatpush1.msra.mxu0 %v41
    %126 = vmatprep.subr.mxu0 0.0
    %127 = vmatpush1.msra.mxu0 %v42
    %128 = vmatprep.subr.mxu0 0.0
    %129 = vmatpush1.msra.mxu0 %v43
    %130 = vmatprep.subr.mxu0 0.0
    %131 = vmatpush1.msra.mxu0 %v44
    %132 = vmatprep.subr.mxu0 0.0
    %133 = vmatpush1.msra.mxu0 %v45
    %134 = vmatprep.subr.mxu0 0.0
    %135 = vmatpush1.msra.mxu0 %v46
    %136 = vmatprep.subr.mxu0 0.0
    %137 = vmatpush1.msra.mxu0 %v47
    %138 = vmatprep.subr.mxu0 0.0
    %139 = vmatpush1.msra.mxu0 %v48
    %140 = vmatprep.subr.mxu0 0.0
    %141 = vmatpush1.msra.mxu0 %v49
    %142 = vmatprep.subr.mxu0 0.0
    %143 = vmatpush1.msra.mxu0 %v50
    %144 = vmatprep.mubr.f32.mxu0 %v16
    %145 = vmatmul.mubr.f32.gmra.mrb[0].mxu0 %v15
    %v146 = vpop.f32.mrb[0].mxu0
    %v147 = vadd.f32 %v74, %v146
    %v148 = vpop.f32.mrb[0].mxu0
    %149 = vdwg.mxu0
    %150 = vmatprep.subr.mxu0 0.0
    %151 = vmatpush1.msra.mxu0 %v51
    %152 = vmatprep.subr.mxu0 0.0
    %153 = vmatpush1.msra.mxu0 %v52
    %154 = vmatprep.subr.mxu0 0.0
    %155 = vmatpush1.msra.mxu0 %v53
    %156 = vmatprep.subr.mxu0 0.0
    %157 = vmatpush1.msra.mxu0 %v54
    %158 = vmatprep.subr.mxu0 0.0
    %159 = vmatpush1.msra.mxu0 %v55
    %160 = vmatprep.subr.mxu0 0.0
    %161 = vmatpush1.msra.mxu0 %v56
    %162 = vmatprep.subr.mxu0 0.0
    %163 = vmatpush1.msra.mxu0 %v57
    %164 = vmatprep.subr.mxu0 0.0
    %165 = vmatpush1.msra.mxu0 %v58
    %166 = vmatprep.subr.mxu0 0.0
    %167 = vmatpush1.msra.mxu0 %v59
    %168 = vmatprep.subr.mxu0 0.0
    %169 = vmatpush1.msra.mxu0 %v60
    %170 = vmatprep.subr.mxu0 0.0
    %171 = vmatpush1.msra.mxu0 %v61
    %172 = vmatprep.subr.mxu0 0.0
    %173 = vmatpush1.msra.mxu0 %v62
    %174 = vmatprep.subr.mxu0 0.0
    %175 = vmatpush1.msra.mxu0 %v63
    %176 = vmatprep.subr.mxu0 0.0
    %177 = vmatpush1.msra.mxu0 %v64
    %178 = vmatprep.subr.mxu0 0.0
    %179 = vmatpush1.msra.mxu0 %v65
    %180 = vmatprep.subr.mxu0 0.0
    %181 = vmatpush1.msra.mxu0 %v66
    %182 = vmatprep.subr.mxu0 0.0
    %183 = vmatpush1.msra.mxu0 %v67
    %184 = vmatprep.subr.mxu0 0.0
    %185 = vmatpush1.msra.mxu0 %v68
    %186 = vmatprep.subr.mxu0 0.0
    %187 = vmatpush1.msra.mxu0 0.0
    %188 = vmatprep.subr.mxu0 0.0
    %189 = vmatpush1.msra.mxu0 0.0
    %190 = vmatprep.subr.mxu0 0.0
    %191 = vmatpush1.msra.mxu0 0.0
    %192 = vmatprep.subr.mxu0 0.0
    %193 = vmatpush1.msra.mxu0 0.0
    %194 = vmatprep.subr.mxu0 0.0
    %195 = vmatpush1.msra.mxu0 0.0
    %196 = vmatprep.subr.mxu0 0.0
    %197 = vmatpush1.msra.mxu0 0.0
    %198 = vmatprep.subr.mxu0 0.0
    %199 = vmatpush1.msra.mxu0 0.0
    %200 = vmatprep.subr.mxu0 0.0
    %201 = vmatpush1.msra.mxu0 0.0
    %202 = vmatprep.subr.mxu0 0.0
    %203 = vmatpush1.msra.mxu0 0.0
    %204 = vmatprep.subr.mxu0 0.0
    %205 = vmatpush1.msra.mxu0 0.0
    %206 = vmatprep.subr.mxu0 0.0
    %207 = vmatpush1.msra.mxu0 0.0
    %208 = vmatprep.subr.mxu0 0.0
    %209 = vmatpush1.msra.mxu0 0.0
    %210 = vmatprep.subr.mxu0 0.0
    %211 = vmatpush1.msra.mxu0 0.0
    %212 = vmatprep.subr.mxu0 0.0
    %213 = vmatpush1.msra.mxu0 0.0
    %214 = vmatprep.mubr.f32.mxu0 %v78
    %215 = vmatmul.mubr.f32.gmra.mrb[0].mxu0 %v17
    %v216 = vpop.f32.mrb[0].mxu0
    %v217 = vadd.f32 %v147, %v216
    %v218 = vpop.f32.mrb[0].mxu0
    %219 = vdwg.mxu0
    %v220 = vmul.f32 %v217, %v217
    %vm221 = vcmask 80896
    %v222 = vsel %vm221, %v220, 0.0
    %223 = vadd.xlane.f32.xlu0 %v222
    %v224 = vpop.xlane.xlu0 %223
    %v225 = vmax.f32 %v224, 1e-24
    %v226 = vrsqrt.pop %v225
    %v227 = vmul.f32 %v217, %v226
    %228 = vst.msk [vmem:[#allocation2] sm:$0xff] %vm221, %v227
    // Predicated region
    $region14: #{tpu_custom_call.1} parent=1 // pred_check
      _
    $region15: #{tpu_custom_call.1} parent=1 // pred_check_branch
      %230 = sbr.rel (0) target = $region17
    $region16: #{tpu_custom_call.1} parent=1 // pred_region
      %s232 = ssub.s32 128, 128
      %233 = vsyncadd [#allocation3], %s232
      %s235 = sshll.u32 [#allocation2], 4
      %s236 = int_to_ptr.vmem [resolvable:$true] %s235
      %238 = dma.vmem_to_hbm [thread:$0]  %s236, 128, %s3, [#allocation3]
    $region17: #{tpu_custom_call.1} parent=1 // pred_fallthru
      _
    // Predicated region
    $region18: #{tpu_custom_call.1} parent=1 // pred_check
      _
    $region19: #{tpu_custom_call.1} parent=1 // pred_check_branch
      %240 = sbr.rel (0) target = $region21
    $region20: #{tpu_custom_call.1} parent=1 // pred_region
      %241 = dma.done [#allocation3], 128
    $region21: #{tpu_custom_call.1} parent=1 // pred_fallthru
      _
    %242 = vsyncpa [#allocation3], 1

</llo_original>
